<compile_context>
chip_gen: v5e
topology: v5e:2x2
jax: 0.10.0
libtpu: 0.0.40
codegen_flags: <defaults>
</compile_context>

<pallas_src>
import jax
import jax.numpy as jnp
from jax import lax
from jax.experimental import pallas as pl
from jax.experimental.pallas import tpu as pltpu

_LANES = 128      # vreg lane width
_ROW_STRIP = 64   # rows per inner-loop step (multiple of 8 / 16 / 32 sublane packing)


def _round_down(a, b):
    return a // b * b


def _sum_rows(x_ref, o_ref, row0, nrows):
    """Write per-row mean of x_ref[row0:row0+nrows, :] into o_ref[row0:row0+nrows, 0]."""
    spatial = x_ref.shape[1]
    n_full, rem = divmod(spatial, _LANES)
    inv = 1.0 / float(spatial)

    if n_full == 0:
        # spatial < 128: single (lane-masked) chunk.
        tail = x_ref[pl.ds(row0, nrows), :].astype(jnp.float32)
        total = jnp.sum(tail, axis=-1, keepdims=True)
    else:
        def add_chunk(k, acc):
            return acc + x_ref[pl.ds(row0, nrows),
                               pl.ds(k * _LANES, _LANES)].astype(jnp.float32)

        acc0 = jnp.zeros((nrows, _LANES), jnp.float32)
        if n_full <= 8:
            # Small spatial: fully unrolled VPU accumulation.
            acc = acc0
            for k in range(n_full):
                acc = add_chunk(k, acc)
        else:
            # Large spatial: rolled loop (partially unrolled), acc stays in vregs.
            acc = lax.fori_loop(0, n_full, add_chunk, acc0, unroll=4)
        total = jnp.sum(acc, axis=-1, keepdims=True)          # one XLU reduce per strip
        if rem:
            tail = x_ref[pl.ds(row0, nrows),
                         pl.ds(n_full * _LANES, rem)].astype(jnp.float32)
            total = total + jnp.sum(tail, axis=-1, keepdims=True)

    o_ref[pl.ds(row0, nrows), :] = (total * inv).astype(o_ref.dtype)


def _global_avg_pool_kernel(x_ref, o_ref):
    # x_ref: (TR, spatial) block in VMEM; o_ref: (TR, 1) block.
    tr = x_ref.shape[0]
    strip = min(_ROW_STRIP, tr)
    n_strips, tail_rows = divmod(tr, strip)

    if n_strips > 1:
        @pl.loop(0, n_strips)
        def _(i):
            row0 = pl.multiple_of(i * strip, strip)
            _sum_rows(x_ref, o_ref, row0, strip)
    elif n_strips == 1:
        _sum_rows(x_ref, o_ref, 0, strip)
    if tail_rows:
        _sum_rows(x_ref, o_ref, n_strips * strip, tail_rows)


def global_avg_pool2d(x):
    """Pallas equivalent of GlobalAvgPool2d.forward: NCHW -> (N, C, 1, 1)."""
    N, C, H, W = x.shape
    rows, spatial = N * C, H * W
    x2d = x.reshape(rows, spatial)  # contiguous view, no copy

    itemsize = x2d.dtype.itemsize
    sub = {4: 8, 2: 16, 1: 32}.get(itemsize, 8)  # sublane packing for the dtype

    # Row-tile size: large enough to amortize the ~0.35us per-grid-step overhead,
    # small enough that 2 double-buffered input blocks (+ (TR,1) out blocks) stay
    # comfortably inside every generation's VMEM budget (incl. v7x's 64 MiB).
    target_block_bytes = 4 * 1024 * 1024
    tr_cap = max(sub, _round_down(target_block_bytes // (spatial * itemsize), sub))
    tr_cap = min(tr_cap, 4096)
    tr = min(tr_cap, _round_down(rows, sub)) if rows >= sub else rows

    out2d = pl.pallas_call(
        _global_avg_pool_kernel,
        out_shape=jax.ShapeDtypeStruct((rows, 1), x.dtype),
        grid=(pl.cdiv(rows, tr),),
        in_specs=[pl.BlockSpec((tr, spatial), lambda i: (i, 0))],
        out_specs=pl.BlockSpec((tr, 1), lambda i: (i, 0)),
        compiler_params=pltpu.CompilerParams(
            dimension_semantics=("parallel",),     # shard row tiles across TCs (v7x)
            vmem_limit_bytes=32 * 1024 * 1024,
        ),
    )(x2d)

    return out2d.reshape(N, C, 1, 1)


if __name__ == "__main__":
    key = jax.random.PRNGKey(0)
    N, C, H, W = 2, 4, 16, 16
    x = jax.random.normal(key, (N, C, H, W), dtype=jnp.float32)

    out = global_avg_pool2d(x)
    jax.block_until_ready(out)

    ref = jnp.mean(x, axis=(2, 3), keepdims=True)
    assert out.shape == (N, C, 1, 1)
    assert jnp.allclose(out, ref, atol=1e-5, rtol=1e-5)

    print("KERNEL_OK")
</pallas_src>

<mosaic_0001>
module attributes {stable_mosaic.version = 11 : i64} {
  func.func @_global_avg_pool_kernel(%arg0: i32, %arg1: memref<8x256xf32, #tpu.memory_space<vmem>>, %arg2: memref<8x1xf32, #tpu.memory_space<vmem>>) attributes {dimension_semantics = [#tpu.dimension_semantics<parallel>], iteration_bounds = array<i64: 1>, scalar_prefetch = 0 : i64, scratch_operands = 0 : i64, tpu.core_type = #tpu.core_type<tc>, window_params = [{transform_indices = @transform_0, window_bounds = array<i64: 8, 256>}, {transform_indices = @transform_1, window_bounds = array<i64: 8, 1>}]} {
    %cst = arith.constant 0.000000e+00 : f32
    %0 = vector.broadcast %cst : f32 to vector<8x128xf32>
    %c0 = arith.constant 0 : index
    %c0_0 = arith.constant 0 : index
    %1 = vector.load %arg1[%c0, %c0_0] : memref<8x256xf32, #tpu.memory_space<vmem>>, vector<8x128xf32>
    %2 = arith.addf %0, %1 : vector<8x128xf32>
    %c0_1 = arith.constant 0 : index
    %c128 = arith.constant 128 : index
    %3 = vector.load %arg1[%c0_1, %c128] : memref<8x256xf32, #tpu.memory_space<vmem>>, vector<8x128xf32>
    %4 = arith.addf %2, %3 : vector<8x128xf32>
    %cst_2 = arith.constant dense<0.000000e+00> : vector<8xf32>
    %5 = vector.multi_reduction <add>, %4, %cst_2 [1] : vector<8x128xf32> to vector<8xf32>
    %6 = vector.shape_cast %5 : vector<8xf32> to vector<8x1xf32>
    %cst_3 = arith.constant 3.906250e-03 : f32
    %7 = vector.broadcast %cst_3 : f32 to vector<8x1xf32>
    %8 = arith.mulf %6, %7 : vector<8x1xf32>
    %c0_4 = arith.constant 0 : index
    %c0_5 = arith.constant 0 : index
    %9 = vector.load %arg2[%c0_4, %c0_5] : memref<8x1xf32, #tpu.memory_space<vmem>>, vector<8x1xf32>
    tpu.vector_store %arg2[%c0_4, %c0_5], %8 {strides = array<i32>} : memref<8x1xf32, #tpu.memory_space<vmem>>, vector<8x1xf32>,
    return
  }
  func.func @transform_0(%arg0: i32) -> (i32, i32) {
    %c0_i32 = arith.constant 0 : i32
    %c0_i32_0 = arith.constant 0 : i32
    return %arg0, %c0_i32 : i32, i32
  }
  func.func @transform_1(%arg0: i32) -> (i32, i32) {
    %c0_i32 = arith.constant 0 : i32
    %c0_i32_0 = arith.constant 0 : i32
    return %arg0, %c0_i32 : i32, i32
  }
}

</mosaic_0001>

<llo_original>
// kernel: tpu_custom_call.1
$region0: #{tpu_custom_call.1}
  #allocation0 [shape = 'u32[]', space=smem, size = 0x4, offset = 0x4, fixed_abs, tag = 'smem constant byte address 0x4 - core index']
  #allocation1 [shape = 'u32[72,128]{1,0:T(1,128)}', space=vmem, size = 0x9000, scoped, tag = 'internal scratch']
  %s0 = inlined_call_operand.hbm [shape: f32[8,256], index: 0, kind: input, shape index: {}]
  %s1 = inlined_call_operand.vmem [shape: f32[8,1], index: 1, kind: output, shape index: {}]
  %s2 = sld [smem:[#allocation0]]
  $region18: #{tpu_custom_call.1} parent=0
    _
  %s4 = ssub.s32 1, %s2
  %s5 = scalar_select 0, %s4, %s2
  $region1: #{tpu_custom_call.1} parent=0
    #allocation2 [shape = 'u8[8192]{0}', space=vmem, size = 0x2000, scoped, tag = 'input window, operand 0, single buffered']
    #allocation3 [shape = 's32[1]{0}', space=sflag, size = 0x4, scoped, tag = 'scoped memory for tpu_custom_call.1']
    %6 = vsyncpa [#allocation3], 0
    // Predicated region
    $region2: #{tpu_custom_call.1} parent=1 // pred_check
      _
    $region3: #{tpu_custom_call.1} parent=1 // pred_check_branch
      %8 = sbr.rel (0) target = $region5
    $region4: #{tpu_custom_call.1} parent=1 // pred_region
      %10 = vsyncadd [#allocation3], 0
      %s12 = sshll.u32 %s0, 4
      %s13 = int_to_ptr.hbm [resolvable:$true] %s12
      %s14 = sshll.u32 [#allocation2], 4
      %s15 = int_to_ptr.vmem [resolvable:$true] %s14
      %17 = dma.hbm_to_vmem [thread:$0]  %s13, 256, %s15, [#allocation3]
    $region5: #{tpu_custom_call.1} parent=1 // pred_fallthru
      _
    // Predicated region
    $region6: #{tpu_custom_call.1} parent=1 // pred_check
      _
    $region7: #{tpu_custom_call.1} parent=1 // pred_check_branch
      %19 = sbr.rel (0) target = $region9
    $region8: #{tpu_custom_call.1} parent=1 // pred_region
      %21 = dma.done [#allocation3], 256
    $region9: #{tpu_custom_call.1} parent=1 // pred_fallthru
      _
    %v22 = vld [vmem:[#allocation2] sm:$0xff]
    %v23 = vadd.f32 %v22, 0.0
    %v24 = vld [vmem:[#allocation2 + $0x8] sm:$0xff]
    %v25 = vadd.f32 %v23, %v24
    %26 = vadd.xlane.f32.xlu0 %v25
    %v27 = vpop.xlane.xlu0 %26
    %v28 = vmul.f32 %v27, 0.00390625
    %vm29 = vcmask 7168
    %30 = vst.msk [vmem:[%s1] sm:$0xff] %vm29, %v28
    // Predicated region
    $region10: #{tpu_custom_call.1} parent=1 // pred_check
      _
    $region11: #{tpu_custom_call.1} parent=1 // pred_check_branch
      %32 = sbr.rel (0) target = $region13
    $region12: #{tpu_custom_call.1} parent=1 // pred_region
      _
    $region13: #{tpu_custom_call.1} parent=1 // pred_fallthru
      _
    // Predicated region
    $region14: #{tpu_custom_call.1} parent=1 // pred_check
      _
    $region15: #{tpu_custom_call.1} parent=1 // pred_check_branch
      %34 = sbr.rel (0) target = $region17
    $region16: #{tpu_custom_call.1} parent=1 // pred_region
      _
    $region17: #{tpu_custom_call.1} parent=1 // pred_fallthru
      _
    %35 = vsyncpa [#allocation3], 1

</llo_original>
